<compile_context>
chip_gen: v6e
topology: v6e:2x2x1
jax: 0.10.0
libtpu: 0.0.40
codegen_flags: <defaults>
</compile_context>

<pallas_src>
import functools

import jax
import jax.numpy as jnp
from jax.experimental import pallas as pl
from jax.experimental.pallas import tpu as pltpu


def _round_up(a, b):
    return ((a + b - 1) // b) * b


def _sublane(dtype):
    # sublane packing: 8 rows for 32-bit, 16 for bf16/fp16, 32 for int8/fp8
    return max(8, 32 // jnp.dtype(dtype).itemsize)


def _tpu_hw():
    """(device_kind lowercase, per-core VMEM capacity bytes), with fallbacks."""
    try:
        kind = jax.devices()[0].device_kind.lower()
    except Exception:
        kind = ""
    vmem = None
    try:
        vmem = getattr(pltpu.get_tpu_info(), "vmem_capacity_bytes", None)
    except Exception:
        vmem = None
    if not vmem:
        vmem = (64 if "v7" in kind else 128) * 1024 * 1024
    return kind, int(vmem)


def _footprint_bytes(tm, tf, d_model_p, x_bytes, w_bytes, out_bytes):
    """VMEM footprint: double-buffered in/out tiles + f32 accumulator."""
    x_t = 2 * tm * d_model_p * x_bytes
    w1_t = 2 * d_model_p * tf * w_bytes
    b1_t = 2 * tf * w_bytes
    w2_t = 2 * tf * d_model_p * w_bytes
    b2_t = 2 * d_model_p * w_bytes
    o_t = 2 * tm * d_model_p * out_bytes
    acc = tm * d_model_p * 4
    return x_t + w1_t + b1_t + w2_t + b2_t + o_t + acc


def _select_tiles(T, d_model_p, d_ff_p, x_dtype, w_dtype, out_dtype):
    """Pick (tm, tf, vmem_limit_bytes) per TPU generation under a VMEM budget."""
    kind, vmem_cap = _tpu_hw()
    budget = (vmem_cap // 8) * 7          # ~112 MiB v5e/v6e, ~56 MiB v7x
    xb = jnp.dtype(x_dtype).itemsize
    wb = jnp.dtype(w_dtype).itemsize
    ob = jnp.dtype(out_dtype).itemsize
    sub = _sublane(x_dtype)

    # Token-tile target at the weight-traffic roofline knee for each chip.
    tm_target = 1024 if "v6" in kind else 512   # v5e / v7x / unknown -> 512
    tm = max(sub, min(tm_target, _round_up(T, sub)))

    # d_ff tile candidates: full d_ff first (weights fully resident, no
    # reduction axis), then divisors of d_ff_p that are multiples of 128.
    cands = [d_ff_p]
    t = min(d_ff_p - 128, 2048)
    while t >= 128:
        if d_ff_p % t == 0:
            cands.append(t)
        t -= 128

    while True:
        for tf in cands:
            if _footprint_bytes(tm, tf, d_model_p, xb, wb, ob) <= budget:
                return tm, tf, budget
        if tm <= sub:
            return tm, cands[-1], budget   # smallest config; let it ride
        tm = max(sub, _round_up(tm // 2, sub))


# ---------------------------------------------------------------------------
# Kernels
# ---------------------------------------------------------------------------

def ffn_resident_kernel(x_ref, w1_ref, b1_ref, w2_ref, b2_ref, o_ref):
    """Whole W1/W2 resident in VMEM; single pass, no accumulator."""
    x = x_ref[...]
    h = jnp.dot(x, w1_ref[...], preferred_element_type=jnp.float32)
    h = jnp.maximum(h + b1_ref[...].astype(jnp.float32), 0.0)
    # TODO(synk): nn.Dropout is identity in eval mode; training-mode stochastic
    # dropout (pltpu.prng_*) intentionally not applied.
    y = jnp.dot(h.astype(x.dtype), w2_ref[...],
                preferred_element_type=jnp.float32)
    o_ref[...] = (y + b2_ref[...].astype(jnp.float32)).astype(o_ref.dtype)


def ffn_streaming_kernel(x_ref, w1_ref, b1_ref, w2_ref, b2_ref, o_ref, acc_ref):
    """d_ff streamed on grid axis 1 with an f32 VMEM accumulator.

    The last reduction step writes o_ref directly from the register total
    (no acc store + reload in the epilogue).
    """
    j = pl.program_id(1)
    nj = pl.num_programs(1)

    @pl.when(j == 0)
    def _():
        acc_ref[...] = jnp.zeros_like(acc_ref)

    x = x_ref[...]
    h = jnp.dot(x, w1_ref[...], preferred_element_type=jnp.float32)
    h = jnp.maximum(h + b1_ref[...].astype(jnp.float32), 0.0)
    total = acc_ref[...] + jnp.dot(h.astype(x.dtype), w2_ref[...],
                                   preferred_element_type=jnp.float32)

    @pl.when(j < nj - 1)
    def _():
        acc_ref[...] = total

    @pl.when(j == nj - 1)
    def _():
        o_ref[...] = (total + b2_ref[...].astype(jnp.float32)).astype(o_ref.dtype)


# ---------------------------------------------------------------------------
# Wrapper
# ---------------------------------------------------------------------------

@functools.partial(jax.jit, static_argnames=("tm", "tf", "compute_dtype"))
def feed_forward(x, w1, b1, w2, b2, *, tm=None, tf=None, compute_dtype=None):
    """x: [..., d_model] -> [..., d_model].

    w1: [d_model, d_ff], b1: [1, d_ff] (or [d_ff]), w2: [d_ff, d_model],
    b2: [1, d_model] (PyTorch Linear weights pre-transposed to [in, out]).
    Weights may be pre-padded with `pad_params` (recommended: avoids per-call
    padding copies). `compute_dtype=jnp.bfloat16` runs the MXU in bf16 for
    f32 checkpoints while keeping f32 accumulation and f32 output.
    """
    orig_shape = x.shape
    d_model = x.shape[-1]
    out_dtype = x.dtype

    if compute_dtype is not None:
        x = x.astype(compute_dtype)
        w1 = w1.astype(compute_dtype)
        b1 = b1.astype(compute_dtype)
        w2 = w2.astype(compute_dtype)
        b2 = b2.astype(compute_dtype)

    b1 = jnp.reshape(b1, (1, -1))
    b2 = jnp.reshape(b2, (1, -1))

    x2 = x.reshape(-1, d_model)
    T = x2.shape[0]

    # Lane-dense feature dims (no-op when weights are pre-padded).
    d_model_p = _round_up(max(d_model, w1.shape[0], w2.shape[1], b2.shape[1]), 128)
    d_ff_p = _round_up(max(w1.shape[1], w2.shape[0], b1.shape[1]), 128)

    tm_auto, tf_auto, vmem_budget = _select_tiles(
        T, d_model_p, d_ff_p, x.dtype, w1.dtype, out_dtype)
    sub = _sublane(x.dtype)
    tm_eff = tm_auto if tm is None else max(
        sub, _round_up(min(tm, _round_up(T, sub)), sub))
    tf_eff = tf_auto if tf is None else max(
        128, _round_up(min(tf, d_ff_p), 128))
    d_ff_p = _round_up(d_ff_p, tf_eff)
    T_pad = _round_up(T, tm_eff)

    # Zero padding is mathematically inert: padded d_model cols of x meet zero
    # rows of W1; padded d_ff cols give relu(0)=0 and meet zero rows of W2;
    # padded output cols are sliced off.
    if x2.shape != (T_pad, d_model_p):
        x2 = jnp.pad(x2, ((0, T_pad - T), (0, d_model_p - d_model)))
    # Weight padding below is a per-call HBM copy; prefer pad_params() once.
    if w1.shape != (d_model_p, d_ff_p):
        w1 = jnp.pad(w1, ((0, d_model_p - w1.shape[0]), (0, d_ff_p - w1.shape[1])))
    if b1.shape != (1, d_ff_p):
        b1 = jnp.pad(b1, ((0, 0), (0, d_ff_p - b1.shape[1])))
    if w2.shape != (d_ff_p, d_model_p):
        w2 = jnp.pad(w2, ((0, d_ff_p - w2.shape[0]), (0, d_model_p - w2.shape[1])))
    if b2.shape != (1, d_model_p):
        b2 = jnp.pad(b2, ((0, 0), (0, d_model_p - b2.shape[1])))

    n_tok_tiles = T_pad // tm_eff
    n_ff_tiles = d_ff_p // tf_eff
    # TODO(synk): v7x megacore for decode-sized T (n_tok_tiles == 1): split the
    # d_ff reduction across the two TensorCores with per-core partials.

    if n_ff_tiles == 1:
        # Whole weights resident: single grid axis over token tiles.
        out = pl.pallas_call(
            ffn_resident_kernel,
            out_shape=jax.ShapeDtypeStruct((T_pad, d_model_p), out_dtype),
            grid_spec=pltpu.PrefetchScalarGridSpec(
                num_scalar_prefetch=0,
                grid=(n_tok_tiles,),
                in_specs=[
                    pl.BlockSpec((tm_eff, d_model_p), lambda i: (i, 0)),   # x tile
                    pl.BlockSpec((d_model_p, d_ff_p), lambda i: (0, 0)),   # W1
                    pl.BlockSpec((1, d_ff_p), lambda i: (0, 0)),           # b1
                    pl.BlockSpec((d_ff_p, d_model_p), lambda i: (0, 0)),   # W2
                    pl.BlockSpec((1, d_model_p), lambda i: (0, 0)),        # b2
                ],
                out_specs=pl.BlockSpec((tm_eff, d_model_p), lambda i: (i, 0)),
            ),
            compiler_params=pltpu.CompilerParams(
                dimension_semantics=("parallel",),
                vmem_limit_bytes=vmem_budget,
            ),
        )(x2, w1, b1, w2, b2)
    else:
        # d_ff streamed on the reduction axis with an f32 accumulator.
        out = pl.pallas_call(
            ffn_streaming_kernel,
            out_shape=jax.ShapeDtypeStruct((T_pad, d_model_p), out_dtype),
            grid_spec=pltpu.PrefetchScalarGridSpec(
                num_scalar_prefetch=0,
                grid=(n_tok_tiles, n_ff_tiles),
                in_specs=[
                    pl.BlockSpec((tm_eff, d_model_p), lambda i, j: (i, 0)),  # x tile
                    pl.BlockSpec((d_model_p, tf_eff), lambda i, j: (0, j)),  # W1 chunk
                    pl.BlockSpec((1, tf_eff), lambda i, j: (0, j)),          # b1 chunk
                    pl.BlockSpec((tf_eff, d_model_p), lambda i, j: (j, 0)),  # W2 chunk
                    pl.BlockSpec((1, d_model_p), lambda i, j: (0, 0)),       # b2
                ],
                out_specs=pl.BlockSpec((tm_eff, d_model_p), lambda i, j: (i, 0)),
                scratch_shapes=[pltpu.VMEM((tm_eff, d_model_p), jnp.float32)],
            ),
            compiler_params=pltpu.CompilerParams(
                dimension_semantics=("parallel", "arbitrary"),
                vmem_limit_bytes=vmem_budget,
            ),
        )(x2, w1, b1, w2, b2)

    return out[:T, :d_model].reshape(orig_shape)


# ---------------------------------------------------------------------------
# Param helpers
# ---------------------------------------------------------------------------

def pad_params(w1, b1, w2, b2, *, align=128):
    """Pad weights ONCE (outside the hot path) to lane-dense multiples of 128."""
    d_model, d_ff = w1.shape
    d_model_p = _round_up(d_model, align)
    d_ff_p = _round_up(d_ff, align)
    w1 = jnp.pad(w1, ((0, d_model_p - d_model), (0, d_ff_p - d_ff)))
    b1 = jnp.pad(jnp.reshape(b1, (1, -1)), ((0, 0), (0, d_ff_p - d_ff)))
    w2 = jnp.pad(w2, ((0, d_ff_p - d_ff), (0, d_model_p - d_model)))
    b2 = jnp.pad(jnp.reshape(b2, (1, -1)), ((0, 0), (0, d_model_p - d_model)))
    return w1, b1, w2, b2


def init_params(key, d_model, d_ff):
    """Deterministic init mimicking nn.Linear (uniform +/- 1/sqrt(fan_in)).
    Weights are stored transposed relative to PyTorch ([in, out])."""
    k1, k2, k3, k4 = jax.random.split(key, 4)
    lim1 = 1.0 / (d_model ** 0.5)
    lim2 = 1.0 / (d_ff ** 0.5)
    w1 = jax.random.uniform(k1, (d_model, d_ff), jnp.float32, -lim1, lim1)
    b1 = jax.random.uniform(k2, (1, d_ff), jnp.float32, -lim1, lim1)
    w2 = jax.random.uniform(k3, (d_ff, d_model), jnp.float32, -lim2, lim2)
    b2 = jax.random.uniform(k4, (1, d_model), jnp.float32, -lim2, lim2)
    return w1, b1, w2, b2


if __name__ == "__main__":
    d_model = 32
    d_ff = 400        # PyTorch module default
    batch, seq = 2, 8

    key = jax.random.PRNGKey(0)
    kx, kp = jax.random.split(key)
    x = jax.random.normal(kx, (batch, seq, d_model), jnp.float32)
    w1, b1, w2, b2 = init_params(kp, d_model, d_ff)

    # Pure-JAX reference (eval mode: dropout = identity).
    y_ref = jnp.maximum(x @ w1 + b1[0], 0.0) @ w2 + b2[0]

    # Recommended path: weights pre-padded once outside the hot loop
    # (resident-weight kernel at these sizes).
    w1p, b1p, w2p, b2p = pad_params(w1, b1, w2, b2)
    y = jax.block_until_ready(feed_forward(x, w1p, b1p, w2p, b2p))
    assert y.shape == x.shape and y.dtype == x.dtype
    assert jnp.allclose(y, y_ref, atol=1e-3, rtol=1e-3), \
        float(jnp.max(jnp.abs(y - y_ref)))

    # Also exercise the unpadded-weight fallback and the d_ff-streaming
    # (accumulator) kernel path by forcing a small tf tile.
    y2 = jax.block_until_ready(feed_forward(x, w1, b1, w2, b2, tf=128))
    assert jnp.allclose(y2, y_ref, atol=1e-3, rtol=1e-3), \
        float(jnp.max(jnp.abs(y2 - y_ref)))

    print("KERNEL_OK")
</pallas_src>

<mosaic_0001>
module attributes {stable_mosaic.version = 11 : i64} {
  func.func @ffn_resident_kernel(%arg0: i32, %arg1: memref<16x128xf32, #tpu.memory_space<vmem>>, %arg2: memref<128x512xf32, #tpu.memory_space<vmem>>, %arg3: memref<1x512xf32, #tpu.memory_space<vmem>>, %arg4: memref<512x128xf32, #tpu.memory_space<vmem>>, %arg5: memref<1x128xf32, #tpu.memory_space<vmem>>, %arg6: memref<16x128xf32, #tpu.memory_space<vmem>>) attributes {dimension_semantics = [#tpu.dimension_semantics<parallel>], iteration_bounds = array<i64: 1>, scalar_prefetch = 0 : i64, scratch_operands = 0 : i64, tpu.core_type = #tpu.core_type<tc>, window_params = [{transform_indices = @transform_0, window_bounds = array<i64: 16, 128>}, {pipeline_mode = #tpu.pipeline_mode<synchronous>, transform_indices = @transform_1, window_bounds = array<i64: 128, 512>}, {pipeline_mode = #tpu.pipeline_mode<synchronous>, transform_indices = @transform_2, window_bounds = array<i64: 1, 512>}, {pipeline_mode = #tpu.pipeline_mode<synchronous>, transform_indices = @transform_3, window_bounds = array<i64: 512, 128>}, {pipeline_mode = #tpu.pipeline_mode<synchronous>, transform_indices = @transform_4, window_bounds = array<i64: 1, 128>}, {transform_indices = @transform_5, window_bounds = array<i64: 16, 128>}]} {
    %c0 = arith.constant 0 : index
    %c0_0 = arith.constant 0 : index
    %0 = vector.load %arg1[%c0, %c0_0] : memref<16x128xf32, #tpu.memory_space<vmem>>, vector<16x128xf32>
    %c0_1 = arith.constant 0 : index
    %c0_2 = arith.constant 0 : index
    %1 = vector.load %arg2[%c0_1, %c0_2] : memref<128x512xf32, #tpu.memory_space<vmem>>, vector<128x512xf32>
    %cst = arith.constant dense<0.000000e+00> : vector<16x512xf32>
    %2 = tpu.matmul %0, %1, %cst {dimension_numbers = #tpu.dot_dimension_numbers<[1], [0], [0], [1], [0, 0, 1, 1], [], []>} : vector<16x128xf32>, vector<128x512xf32>, vector<16x512xf32> -> vector<16x512xf32>
    %c0_3 = arith.constant 0 : index
    %c0_4 = arith.constant 0 : index
    %3 = vector.load %arg3[%c0_3, %c0_4] : memref<1x512xf32, #tpu.memory_space<vmem>>, vector<1x512xf32>
    %4 = vector.broadcast %3 : vector<1x512xf32> to vector<16x512xf32>
    %5 = arith.addf %2, %4 : vector<16x512xf32>
    %cst_5 = arith.constant 0.000000e+00 : f32
    %6 = vector.broadcast %cst_5 : f32 to vector<16x512xf32>
    %7 = arith.maximumf %5, %6 : vector<16x512xf32>
    %c0_6 = arith.constant 0 : index
    %c0_7 = arith.constant 0 : index
    %8 = vector.load %arg4[%c0_6, %c0_7] : memref<512x128xf32, #tpu.memory_space<vmem>>, vector<512x128xf32>
    %cst_8 = arith.constant dense<0.000000e+00> : vector<16x128xf32>
    %9 = tpu.matmul %7, %8, %cst_8 {dimension_numbers = #tpu.dot_dimension_numbers<[1], [0], [0], [1], [0, 0, 1, 1], [], []>} : vector<16x512xf32>, vector<512x128xf32>, vector<16x128xf32> -> vector<16x128xf32>
    %c0_9 = arith.constant 0 : index
    %c0_10 = arith.constant 0 : index
    %10 = vector.load %arg5[%c0_9, %c0_10] : memref<1x128xf32, #tpu.memory_space<vmem>>, vector<1x128xf32>
    %11 = vector.broadcast %10 : vector<1x128xf32> to vector<16x128xf32>
    %12 = arith.addf %9, %11 : vector<16x128xf32>
    %c0_11 = arith.constant 0 : index
    %c0_12 = arith.constant 0 : index
    %13 = vector.load %arg6[%c0_11, %c0_12] : memref<16x128xf32, #tpu.memory_space<vmem>>, vector<16x128xf32>
    tpu.vector_store %arg6[%c0_11, %c0_12], %12 {strides = array<i32>} : memref<16x128xf32, #tpu.memory_space<vmem>>, vector<16x128xf32>,
    return
  }
  func.func @transform_0(%arg0: i32) -> (i32, i32) {
    %c0_i32 = arith.constant 0 : i32
    %c0_i32_0 = arith.constant 0 : i32
    return %arg0, %c0_i32 : i32, i32
  }
  func.func @transform_1(%arg0: i32) -> (i32, i32) {
    %c0_i32 = arith.constant 0 : i32
    %c0_i32_0 = arith.constant 0 : i32
    %c0_i32_1 = arith.constant 0 : i32
    return %c0_i32, %c0_i32_0 : i32, i32
  }
  func.func @transform_2(%arg0: i32) -> (i32, i32) {
    %c0_i32 = arith.constant 0 : i32
    %c0_i32_0 = arith.constant 0 : i32
    %c0_i32_1 = arith.constant 0 : i32
    return %c0_i32, %c0_i32_0 : i32, i32
  }
  func.func @transform_3(%arg0: i32) -> (i32, i32) {
    %c0_i32 = arith.constant 0 : i32
    %c0_i32_0 = arith.constant 0 : i32
    %c0_i32_1 = arith.constant 0 : i32
    return %c0_i32, %c0_i32_0 : i32, i32
  }
  func.func @transform_4(%arg0: i32) -> (i32, i32) {
    %c0_i32 = arith.constant 0 : i32
    %c0_i32_0 = arith.constant 0 : i32
    %c0_i32_1 = arith.constant 0 : i32
    return %c0_i32, %c0_i32_0 : i32, i32
  }
  func.func @transform_5(%arg0: i32) -> (i32, i32) {
    %c0_i32 = arith.constant 0 : i32
    %c0_i32_0 = arith.constant 0 : i32
    return %arg0, %c0_i32 : i32, i32
  }
}

</mosaic_0001>

<llo_original>
// kernel: feed_forward.1
$region0: #{feed_forward.1}
  #allocation0 [shape = 'u32[]', space=smem, size = 0x4, offset = 0x4, fixed_abs, tag = 'smem constant byte address 0x4 - core index']
  #allocation1 [shape = 'u32[144,128]{1,0:T(1,128)}', space=vmem, size = 0x12000, scoped, tag = 'internal scratch']
  %s0 = inlined_call_operand.vmem [shape: f32[16,128], index: 0, kind: input, shape index: {}]
  %s1 = inlined_call_operand.hbm [shape: f32[128,512], index: 1, kind: input, shape index: {}]
  %s2 = inlined_call_operand.vmem [shape: f32[1,512], index: 2, kind: input, shape index: {}]
  %s3 = inlined_call_operand.hbm [shape: f32[512,128], index: 3, kind: input, shape index: {}]
  %s4 = inlined_call_operand.vmem [shape: f32[1,128], index: 4, kind: input, shape index: {}]
  %s5 = inlined_call_operand.vmem [shape: f32[16,128], index: 5, kind: output, shape index: {}]
  %s6 = sld [smem:[#allocation0]]
  $region38: #{feed_forward.1} parent=0
    _
  %s8 = ssub.s32 1, %s6
  %s9 = scalar_select 0, %s8, %s6
  $region1: #{feed_forward.1} parent=0
    #allocation2 [shape = 'u8[262144]{0}', space=vmem, size = 0x40000, scoped, tag = 'input window, operand 1, single buffered']
    #allocation3 [shape = 's32[1]{0}', space=sflag, size = 0x4, scoped, tag = 'scoped memory for feed_forward.1']
    #allocation4 [shape = 'u8[262144]{0}', space=vmem, size = 0x40000, scoped, tag = 'input window, operand 3, single buffered']
    #allocation5 [shape = 's32[1]{0}', space=sflag, size = 0x4, scoped, tag = 'scoped memory for feed_forward.1']
    %10 = vsyncpa [#allocation3], 0
    %11 = vsyncpa [#allocation5], 0
    // Predicated region
    $region2: #{feed_forward.1} parent=1 // pred_check
      _
    $region3: #{feed_forward.1} parent=1 // pred_check_branch
      %13 = sbr.rel (0) target = $region5
    $region4: #{feed_forward.1} parent=1 // pred_region
      _
    $region5: #{feed_forward.1} parent=1 // pred_fallthru
      _
    // Predicated region
    $region6: #{feed_forward.1} parent=1 // pred_check
      _
    $region7: #{feed_forward.1} parent=1 // pred_check_branch
      %15 = sbr.rel (0) target = $region9
    $region8: #{feed_forward.1} parent=1 // pred_region
      %s17 = ssub.s32 8192, 8192
      %18 = vsyncadd [#allocation3], %s17
      %s19 = sshll.u32 [#allocation2], 4
      %s20 = int_to_ptr.vmem [resolvable:$true] %s19
      %25 = dma.hbm_to_vmem [thread:$0]  %s1, 8192, %s20, [#allocation3], 512, 512, 32
    $region9: #{feed_forward.1} parent=1 // pred_fallthru
      _
    // Predicated region
    $region10: #{feed_forward.1} parent=1 // pred_check
      _
    $region11: #{feed_forward.1} parent=1 // pred_check_branch
      %27 = sbr.rel (0) target = $region13
    $region12: #{feed_forward.1} parent=1 // pred_region
      _
    $region13: #{feed_forward.1} parent=1 // pred_fallthru
      _
    // Predicated region
    $region14: #{feed_forward.1} parent=1 // pred_check
      _
    $region15: #{feed_forward.1} parent=1 // pred_check_branch
      %29 = sbr.rel (0) target = $region17
    $region16: #{feed_forward.1} parent=1 // pred_region
      %s31 = ssub.s32 8192, 8192
      %32 = vsyncadd [#allocation5], %s31
      %s33 = sshll.u32 [#allocation4], 4
      %s34 = int_to_ptr.vmem [resolvable:$true] %s33
      %39 = dma.hbm_to_vmem [thread:$0]  %s3, 8192, %s34, [#allocation5], 128, 128, 8
    $region17: #{feed_forward.1} parent=1 // pred_fallthru
      _
    // Predicated region
    $region18: #{feed_forward.1} parent=1 // pred_check
      _
    $region19: #{feed_forward.1} parent=1 // pred_check_branch
      %41 = sbr.rel (0) target = $region21
    $region20: #{feed_forward.1} parent=1 // pred_region
      _
    $region21: #{feed_forward.1} parent=1 // pred_fallthru
      _
    // Predicated region
    $region22: #{feed_forward.1} parent=1 // pred_check
      _
    $region23: #{feed_forward.1} parent=1 // pred_check_branch
      %43 = sbr.rel (0) target = $region25
    $region24: #{feed_forward.1} parent=1 // pred_region
      %44 = dma.done [#allocation3], 8192
    $region25: #{feed_forward.1} parent=1 // pred_fallthru
      _
    // Predicated region
    $region26: #{feed_forward.1} parent=1 // pred_check
      _
    $region27: #{feed_forward.1} parent=1 // pred_check_branch
      %46 = sbr.rel (0) target = $region29
    $region28: #{feed_forward.1} parent=1 // pred_region
      %47 = dma.done [#allocation5], 8192
    $region29: #{feed_forward.1} parent=1 // pred_fallthru
      _
    %v48 = vld [vmem:[%s0] sm:$0xff]
    %v49 = vld [vmem:[%s0 + $0x8] sm:$0xff]
    %v50 = vld [vmem:[#allocation2] sm:$0xff]
    %v51 = vld [vmem:[#allocation2 + $0x8] sm:$0xff]
    %v52 = vld [vmem:[#allocation2 + $0x10] sm:$0xff]
    %v53 = vld [vmem:[#allocation2 + $0x18] sm:$0xff]
    %v54 = vld [vmem:[#allocation2 + $0x20] sm:$0xff]
    %v55 = vld [vmem:[#allocation2 + $0x28] sm:$0xff]
    %v56 = vld [vmem:[#allocation2 + $0x30] sm:$0xff]
    %v57 = vld [vmem:[#allocation2 + $0x38] sm:$0xff]
    %v58 = vld [vmem:[#allocation2 + $0x40] sm:$0xff]
    %v59 = vld [vmem:[#allocation2 + $0x48] sm:$0xff]
    %v60 = vld [vmem:[#allocation2 + $0x50] sm:$0xff]
    %v61 = vld [vmem:[#allocation2 + $0x58] sm:$0xff]
    %v62 = vld [vmem:[#allocation2 + $0x60] sm:$0xff]
    %v63 = vld [vmem:[#allocation2 + $0x68] sm:$0xff]
    %v64 = vld [vmem:[#allocation2 + $0x70] sm:$0xff]
    %v65 = vld [vmem:[#allocation2 + $0x78] sm:$0xff]
    %v66 = vld [vmem:[#allocation2 + $0x80] sm:$0xff]
    %v67 = vld [vmem:[#allocation2 + $0x88] sm:$0xff]
    %v68 = vld [vmem:[#allocation2 + $0x90] sm:$0xff]
    %v69 = vld [vmem:[#allocation2 + $0x98] sm:$0xff]
    %v70 = vld [vmem:[#allocation2 + $0xa0] sm:$0xff]
    %v71 = vld [vmem:[#allocation2 + $0xa8] sm:$0xff]
    %v72 = vld [vmem:[#allocation2 + $0xb0] sm:$0xff]
    %v73 = vld [vmem:[#allocation2 + $0xb8] sm:$0xff]
    %v74 = vld [vmem:[#allocation2 + $0xc0] sm:$0xff]
    %v75 = vld [vmem:[#allocation2 + $0xc8] sm:$0xff]
    %v76 = vld [vmem:[#allocation2 + $0xd0] sm:$0xff]
    %v77 = vld [vmem:[#allocation2 + $0xd8] sm:$0xff]
    %v78 = vld [vmem:[#allocation2 + $0xe0] sm:$0xff]
    %v79 = vld [vmem:[#allocation2 + $0xe8] sm:$0xff]
    %v80 = vld [vmem:[#allocation2 + $0xf0] sm:$0xff]
    %v81 = vld [vmem:[#allocation2 + $0xf8] sm:$0xff]
    %v82 = vld [vmem:[#allocation2 + $0x100] sm:$0xff]
    %v83 = vld [vmem:[#allocation2 + $0x108] sm:$0xff]
    %v84 = vld [vmem:[#allocation2 + $0x110] sm:$0xff]
    %v85 = vld [vmem:[#allocation2 + $0x118] sm:$0xff]
    %v86 = vld [vmem:[#allocation2 + $0x120] sm:$0xff]
    %v87 = vld [vmem:[#allocation2 + $0x128] sm:$0xff]
    %v88 = vld [vmem:[#allocation2 + $0x130] sm:$0xff]
    %v89 = vld [vmem:[#allocation2 + $0x138] sm:$0xff]
    %v90 = vld [vmem:[#allocation2 + $0x140] sm:$0xff]
    %v91 = vld [vmem:[#allocation2 + $0x148] sm:$0xff]
    %v92 = vld [vmem:[#allocation2 + $0x150] sm:$0xff]
    %v93 = vld [vmem:[#allocation2 + $0x158] sm:$0xff]
    %v94 = vld [vmem:[#allocation2 + $0x160] sm:$0xff]
    %v95 = vld [vmem:[#allocation2 + $0x168] sm:$0xff]
    %v96 = vld [vmem:[#allocation2 + $0x170] sm:$0xff]
    %v97 = vld [vmem:[#allocation2 + $0x178] sm:$0xff]
    %v98 = vld [vmem:[#allocation2 + $0x180] sm:$0xff]
    %v99 = vld [vmem:[#allocation2 + $0x188] sm:$0xff]
    %v100 = vld [vmem:[#allocation2 + $0x190] sm:$0xff]
    %v101 = vld [vmem:[#allocation2 + $0x198] sm:$0xff]
    %v102 = vld [vmem:[#allocation2 + $0x1a0] sm:$0xff]
    %v103 = vld [vmem:[#allocation2 + $0x1a8] sm:$0xff]
    %v104 = vld [vmem:[#allocation2 + $0x1b0] sm:$0xff]
    %v105 = vld [vmem:[#allocation2 + $0x1b8] sm:$0xff]
    %v106 = vld [vmem:[#allocation2 + $0x1c0] sm:$0xff]
    %v107 = vld [vmem:[#allocation2 + $0x1c8] sm:$0xff]
    %v108 = vld [vmem:[#allocation2 + $0x1d0] sm:$0xff]
    %v109 = vld [vmem:[#allocation2 + $0x1d8] sm:$0xff]
    %v110 = vld [vmem:[#allocation2 + $0x1e0] sm:$0xff]
    %v111 = vld [vmem:[#allocation2 + $0x1e8] sm:$0xff]
    %v112 = vld [vmem:[#allocation2 + $0x1f0] sm:$0xff]
    %v113 = vld [vmem:[#allocation2 + $0x1f8] sm:$0xff]
    %v114 = vld [vmem:[%s2] sm:$0xf]
    %v116 = vlaneseq
    %v117 = vshrl.u32 %v116, 7
    %v118 = vsub.s32 0, %v117
    %v119 = vrot.slane %v114, %v118
    %v120 = vlaneseq
    %v121 = vshrl.u32 %v120, 7
    %v122 = vsub.s32 1, %v121
    %v123 = vrot.slane %v114, %v122
    %v124 = vlaneseq
    %v125 = vshrl.u32 %v124, 7
    %v126 = vsub.s32 2, %v125
    %v127 = vrot.slane %v114, %v126
    %v128 = vlaneseq
    %v129 = vshrl.u32 %v128, 7
    %v130 = vsub.s32 3, %v129
    %v131 = vrot.slane %v114, %v130
    %136 = vmatprep.subr.mxu0 %v111
    %137 = vmatpush1.msra.mxu0 %v110
    %138 = vmatprep.subr.mxu0 %v107
    %139 = vmatpush1.msra.mxu0 %v106
    %140 = vmatprep.subr.mxu0 %v103
    %141 = vmatpush1.msra.mxu0 %v102
    %142 = vmatprep.subr.mxu0 %v99
    %143 = vmatpush1.msra.mxu0 %v98
    %144 = vmatprep.subr.mxu0 %v95
    %145 = vmatpush1.msra.mxu0 %v94
    %146 = vmatprep.subr.mxu0 %v91
    %147 = vmatpush1.msra.mxu0 %v90
    %148 = vmatprep.subr.mxu0 %v87
    %149 = vmatpush1.msra.mxu0 %v86
    %150 = vmatprep.subr.mxu0 %v83
    %151 = vmatpush1.msra.mxu0 %v82
    %152 = vmatprep.subr.mxu0 %v79
    %153 = vmatpush1.msra.mxu0 %v78
    %154 = vmatprep.subr.mxu0 %v75
    %155 = vmatpush1.msra.mxu0 %v74
    %156 = vmatprep.subr.mxu0 %v71
    %157 = vmatpush1.msra.mxu0 %v70
    %158 = vmatprep.subr.mxu0 %v67
    %159 = vmatpush1.msra.mxu0 %v66
    %160 = vmatprep.subr.mxu0 %v63
    %161 = vmatpush1.msra.mxu0 %v62
    %162 = vmatprep.subr.mxu0 %v59
    %163 = vmatpush1.msra.mxu0 %v58
    %164 = vmatprep.subr.mxu0 %v55
    %165 = vmatpush1.msra.mxu0 %v54
    %166 = vmatprep.subr.mxu0 %v51
    %167 = vmatpush1.msra.mxu0 %v50
    %168 = vmatprep.subr.mxu0 0.0
    %169 = vmatpush2.msra.mxu0 0.0
    %170 = vmatprep.subr.mxu0 0.0
    %171 = vmatpush2.msra.mxu0 0.0
    %172 = vmatprep.subr.mxu0 0.0
    %173 = vmatpush2.msra.mxu0 0.0
    %174 = vmatprep.subr.mxu0 0.0
    %175 = vmatpush2.msra.mxu0 0.0
    %176 = vmatprep.subr.mxu0 0.0
    %177 = vmatpush2.msra.mxu0 0.0
    %178 = vmatprep.subr.mxu0 0.0
    %179 = vmatpush2.msra.mxu0 0.0
    %180 = vmatprep.subr.mxu0 0.0
    %181 = vmatpush2.msra.mxu0 0.0
    %182 = vmatprep.subr.mxu0 0.0
    %183 = vmatpush2.msra.mxu0 0.0
    %184 = vmatprep.subr.mxu0 0.0
    %185 = vmatpush2.msra.mxu0 0.0
    %186 = vmatprep.subr.mxu0 0.0
    %187 = vmatpush2.msra.mxu0 0.0
    %188 = vmatprep.subr.mxu0 0.0
    %189 = vmatpush2.msra.mxu0 0.0
    %190 = vmatprep.subr.mxu0 0.0
    %191 = vmatpush2.msra.mxu0 0.0
    %192 = vmatprep.subr.mxu0 0.0
    %193 = vmatpush2.msra.mxu0 0.0
    %194 = vmatprep.subr.mxu0 0.0
    %195 = vmatpush2.msra.mxu0 0.0
    %196 = vmatprep.subr.mxu0 0.0
    %197 = vmatpush2.msra.mxu0 0.0
    %198 = vmatprep.subr.mxu0 0.0
    %199 = vmatpush2.msra.mxu0 0.0
    %200 = vmatprep.mubr.f32.mxu0 0.0
    %201 = vmatmul.mubr.f32.gmra.mxu0 %v48
    %v202 = vpop.f32.mrf.mxu0
    %v203 = vadd.f32 %v119, %v202
    %v204 = vpop.f32.mrf.mxu0
    %v205 = vadd.f32 %v123, %v204
    %206 = vmatprep.mubr.f32.mxu0 0.0
    %207 = vmatmul.mubr.f32.gmra.mxu0 %v49
    %v208 = vpop.f32.mrf.mxu0
    %v209 = vadd.f32 %v119, %v208
    %v210 = vpop.f32.mrf.mxu0
    %v211 = vadd.f32 %v123, %v210
    %212 = vdwg.mxu0
    %213 = vmatprep.subr.mxu0 %v113
    %214 = vmatpush1.msra.mxu0 %v112
    %215 = vmatprep.subr.mxu0 %v109
    %216 = vmatpush1.msra.mxu0 %v108
    %217 = vmatprep.subr.mxu0 %v105
    %218 = vmatpush1.msra.mxu0 %v104
    %219 = vmatprep.subr.mxu0 %v101
    %220 = vmatpush1.msra.mxu0 %v100
    %221 = vmatprep.subr.mxu0 %v97
    %222 = vmatpush1.msra.mxu0 %v96
    %223 = vmatprep.subr.mxu0 %v93
    %224 = vmatpush1.msra.mxu0 %v92
    %225 = vmatprep.subr.mxu0 %v89
    %226 = vmatpush1.msra.mxu0 %v88
    %227 = vmatprep.subr.mxu0 %v85
    %228 = vmatpush1.msra.mxu0 %v84
    %229 = vmatprep.subr.mxu0 %v81
    %230 = vmatpush1.msra.mxu0 %v80
    %231 = vmatprep.subr.mxu0 %v77
    %232 = vmatpush1.msra.mxu0 %v76
    %233 = vmatprep.subr.mxu0 %v73
    %234 = vmatpush1.msra.mxu0 %v72
    %235 = vmatprep.subr.mxu0 %v69
    %236 = vmatpush1.msra.mxu0 %v68
    %237 = vmatprep.subr.mxu0 %v65
    %238 = vmatpush1.msra.mxu0 %v64
    %239 = vmatprep.subr.mxu0 %v61
    %240 = vmatpush1.msra.mxu0 %v60
    %241 = vmatprep.subr.mxu0 %v57
    %242 = vmatpush1.msra.mxu0 %v56
    %243 = vmatprep.subr.mxu0 %v53
    %244 = vmatpush1.msra.mxu0 %v52
    %245 = vmatprep.subr.mxu0 0.0
    %246 = vmatpush2.msra.mxu0 0.0
    %247 = vmatprep.subr.mxu0 0.0
    %248 = vmatpush2.msra.mxu0 0.0
    %249 = vmatprep.subr.mxu0 0.0
    %250 = vmatpush2.msra.mxu0 0.0
    %251 = vmatprep.subr.mxu0 0.0
    %252 = vmatpush2.msra.mxu0 0.0
    %253 = vmatprep.subr.mxu0 0.0
    %254 = vmatpush2.msra.mxu0 0.0
    %255 = vmatprep.subr.mxu0 0.0
    %256 = vmatpush2.msra.mxu0 0.0
    %257 = vmatprep.subr.mxu0 0.0
    %258 = vmatpush2.msra.mxu0 0.0
    %259 = vmatprep.subr.mxu0 0.0
    %260 = vmatpush2.msra.mxu0 0.0
    %261 = vmatprep.subr.mxu0 0.0
    %262 = vmatpush2.msra.mxu0 0.0
    %263 = vmatprep.subr.mxu0 0.0
    %264 = vmatpush2.msra.mxu0 0.0
    %265 = vmatprep.subr.mxu0 0.0
    %266 = vmatpush2.msra.mxu0 0.0
    %267 = vmatprep.subr.mxu0 0.0
    %268 = vmatpush2.msra.mxu0 0.0
    %269 = vmatprep.subr.mxu0 0.0
    %270 = vmatpush2.msra.mxu0 0.0
    %271 = vmatprep.subr.mxu0 0.0
    %272 = vmatpush2.msra.mxu0 0.0
    %273 = vmatprep.subr.mxu0 0.0
    %274 = vmatpush2.msra.mxu0 0.0
    %275 = vmatprep.subr.mxu0 0.0
    %276 = vmatpush2.msra.mxu0 0.0
    %277 = vmatprep.mubr.f32.mxu0 0.0
    %278 = vmatmul.mubr.f32.gmra.mxu0 %v48
    %v279 = vpop.f32.mrf.mxu0
    %v280 = vadd.f32 %v127, %v279
    %v281 = vpop.f32.mrf.mxu0
    %v282 = vadd.f32 %v131, %v281
    %283 = vmatprep.mubr.f32.mxu0 0.0
    %284 = vmatmul.mubr.f32.gmra.mxu0 %v49
    %v285 = vpop.f32.mrf.mxu0
    %v286 = vadd.f32 %v127, %v285
    %v287 = vpop.f32.mrf.mxu0
    %v288 = vadd.f32 %v131, %v287
    %289 = vdwg.mxu0
    %v290 = vmax.f32 %v203, 0.0
    %v291 = vmax.f32 %v205, 0.0
    %v292 = vmax.f32 %v280, 0.0
    %v293 = vmax.f32 %v282, 0.0
    %v294 = vmax.f32 %v209, 0.0
    %v295 = vmax.f32 %v211, 0.0
    %v296 = vmax.f32 %v286, 0.0
    %v297 = vmax.f32 %v288, 0.0
    %v298 = vld [vmem:[#allocation4] sm:$0xff]
    %v299 = vld [vmem:[#allocation4 + $0x8] sm:$0xff]
    %v300 = vld [vmem:[#allocation4 + $0x10] sm:$0xff]
    %v301 = vld [vmem:[#allocation4 + $0x18] sm:$0xff]
    %v302 = vld [vmem:[#allocation4 + $0x20] sm:$0xff]
    %v303 = vld [vmem:[#allocation4 + $0x28] sm:$0xff]
    %v304 = vld [vmem:[#allocation4 + $0x30] sm:$0xff]
    %v305 = vld [vmem:[#allocation4 + $0x38] sm:$0xff]
    %v306 = vld [vmem:[#allocation4 + $0x40] sm:$0xff]
    %v307 = vld [vmem:[#allocation4 + $0x48] sm:$0xff]
    %v308 = vld [vmem:[#allocation4 + $0x50] sm:$0xff]
    %v309 = vld [vmem:[#allocation4 + $0x58] sm:$0xff]
    %v310 = vld [vmem:[#allocation4 + $0x60] sm:$0xff]
    %v311 = vld [vmem:[#allocation4 + $0x68] sm:$0xff]
    %v312 = vld [vmem:[#allocation4 + $0x70] sm:$0xff]
    %v313 = vld [vmem:[#allocation4 + $0x78] sm:$0xff]
    %v314 = vld [vmem:[#allocation4 + $0x80] sm:$0xff]
    %v315 = vld [vmem:[#allocation4 + $0x88] sm:$0xff]
    %v316 = vld [vmem:[#allocation4 + $0x90] sm:$0xff]
    %v317 = vld [vmem:[#allocation4 + $0x98] sm:$0xff]
    %v318 = vld [vmem:[#allocation4 + $0xa0] sm:$0xff]
    %v319 = vld [vmem:[#allocation4 + $0xa8] sm:$0xff]
    %v320 = vld [vmem:[#allocation4 + $0xb0] sm:$0xff]
    %v321 = vld [vmem:[#allocation4 + $0xb8] sm:$0xff]
    %v322 = vld [vmem:[#allocation4 + $0xc0] sm:$0xff]
    %v323 = vld [vmem:[#allocation4 + $0xc8] sm:$0xff]
    %v324 = vld [vmem:[#allocation4 + $0xd0] sm:$0xff]
    %v325 = vld [vmem:[#allocation4 + $0xd8] sm:$0xff]
    %v326 = vld [vmem:[#allocation4 + $0xe0] sm:$0xff]
    %v327 = vld [vmem:[#allocation4 + $0xe8] sm:$0xff]
    %v328 = vld [vmem:[#allocation4 + $0xf0] sm:$0xff]
    %v329 = vld [vmem:[#allocation4 + $0xf8] sm:$0xff]
    %v330 = vld [vmem:[#allocation4 + $0x100] sm:$0xff]
    %v331 = vld [vmem:[#allocation4 + $0x108] sm:$0xff]
    %v332 = vld [vmem:[#allocation4 + $0x110] sm:$0xff]
    %v333 = vld [vmem:[#allocation4 + $0x118] sm:$0xff]
    %v334 = vld [vmem:[#allocation4 + $0x120] sm:$0xff]
    %v335 = vld [vmem:[#allocation4 + $0x128] sm:$0xff]
    %v336 = vld [vmem:[#allocation4 + $0x130] sm:$0xff]
    %v337 = vld [vmem:[#allocation4 + $0x138] sm:$0xff]
    %v338 = vld [vmem:[#allocation4 + $0x140] sm:$0xff]
    %v339 = vld [vmem:[#allocation4 + $0x148] sm:$0xff]
    %v340 = vld [vmem:[#allocation4 + $0x150] sm:$0xff]
    %v341 = vld [vmem:[#allocation4 + $0x158] sm:$0xff]
    %v342 = vld [vmem:[#allocation4 + $0x160] sm:$0xff]
    %v343 = vld [vmem:[#allocation4 + $0x168] sm:$0xff]
    %v344 = vld [vmem:[#allocation4 + $0x170] sm:$0xff]
    %v345 = vld [vmem:[#allocation4 + $0x178] sm:$0xff]
    %v346 = vld [vmem:[#allocation4 + $0x180] sm:$0xff]
    %v347 = vld [vmem:[#allocation4 + $0x188] sm:$0xff]
    %v348 = vld [vmem:[#allocation4 + $0x190] sm:$0xff]
    %v349 = vld [vmem:[#allocation4 + $0x198] sm:$0xff]
    %v350 = vld [vmem:[#allocation4 + $0x1a0] sm:$0xff]
    %v351 = vld [vmem:[#allocation4 + $0x1a8] sm:$0xff]
    %v352 = vld [vmem:[#allocation4 + $0x1b0] sm:$0xff]
    %v353 = vld [vmem:[#allocation4 + $0x1b8] sm:$0xff]
    %v354 = vld [vmem:[#allocation4 + $0x1c0] sm:$0xff]
    %v355 = vld [vmem:[#allocation4 + $0x1c8] sm:$0xff]
    %v356 = vld [vmem:[#allocation4 + $0x1d0] sm:$0xff]
    %v357 = vld [vmem:[#allocation4 + $0x1d8] sm:$0xff]
    %v358 = vld [vmem:[#allocation4 + $0x1e0] sm:$0xff]
    %v359 = vld [vmem:[#allocation4 + $0x1e8] sm:$0xff]
    %v360 = vld [vmem:[#allocation4 + $0x1f0] sm:$0xff]
    %v361 = vld [vmem:[#allocation4 + $0x1f8] sm:$0xff]
    %v362 = vld [vmem:[%s4] sm:$0x1]
    %v364 = vlaneseq
    %v365 = vshrl.u32 %v364, 7
    %v366 = vsub.s32 0, %v365
    %v367 = vrot.slane %v362, %v366
    %369 = vmatprep.subr.mxu0 0.0
    %370 = vmatpush1.msra.mxu0 %v313
    %371 = vmatprep.subr.mxu0 0.0
    %372 = vmatpush1.msra.mxu0 %v312
    %373 = vmatprep.subr.mxu0 0.0
    %374 = vmatpush1.msra.mxu0 %v311
    %375 = vmatprep.subr.mxu0 0.0
    %376 = vmatpush1.msra.mxu0 %v310
    %377 = vmatprep.subr.mxu0 0.0
    %378 = vmatpush1.msra.mxu0 %v309
    %379 = vmatprep.subr.mxu0 0.0
    %380 = vmatpush1.msra.mxu0 %v308
    %381 = vmatprep.subr.mxu0 0.0
    %382 = vmatpush1.msra.mxu0 %v307
    %383 = vmatprep.subr.mxu0 0.0
    %384 = vmatpush1.msra.mxu0 %v306
    %385 = vmatprep.subr.mxu0 0.0
    %386 = vmatpush1.msra.mxu0 %v305
    %387 = vmatprep.subr.mxu0 0.0
    %388 = vmatpush1.msra.mxu0 %v304
    %389 = vmatprep.subr.mxu0 0.0
    %390 = vmatpush1.msra.mxu0 %v303
    %391 = vmatprep.subr.mxu0 0.0
    %392 = vmatpush1.msra.mxu0 %v302
    %393 = vmatprep.subr.mxu0 0.0
    %394 = vmatpush1.msra.mxu0 %v301
    %395 = vmatprep.subr.mxu0 0.0
    %396 = vmatpush1.msra.mxu0 %v300
    %397 = vmatprep.subr.mxu0 0.0
    %398 = vmatpush1.msra.mxu0 %v299
    %399 = vmatprep.subr.mxu0 0.0
    %400 = vmatpush1.msra.mxu0 %v298
    %401 = vmatprep.subr.mxu0 0.0
    %402 = vmatpush2.msra.mxu0 %v329
    %403 = vmatprep.subr.mxu0 0.0
    %404 = vmatpush2.msra.mxu0 %v328
    %405 = vmatprep.subr.mxu0 0.0
    %406 = vmatpush2.msra.mxu0 %v327
    %407 = vmatprep.subr.mxu0 0.0
    %408 = vmatpush2.msra.mxu0 %v326
    %409 = vmatprep.subr.mxu0 0.0
    %410 = vmatpush2.msra.mxu0 %v325
    %411 = vmatprep.subr.mxu0 0.0
    %412 = vmatpush2.msra.mxu0 %v324
    %413 = vmatprep.subr.mxu0 0.0
    %414 = vmatpush2.msra.mxu0 %v323
    %415 = vmatprep.subr.mxu0 0.0
    %416 = vmatpush2.msra.mxu0 %v322
    %417 = vmatprep.subr.mxu0 0.0
    %418 = vmatpush2.msra.mxu0 %v321
    %419 = vmatprep.subr.mxu0 0.0
    %420 = vmatpush2.msra.mxu0 %v320
    %421 = vmatprep.subr.mxu0 0.0
    %422 = vmatpush2.msra.mxu0 %v319
    %423 = vmatprep.subr.mxu0 0.0
    %424 = vmatpush2.msra.mxu0 %v318
    %425 = vmatprep.subr.mxu0 0.0
    %426 = vmatpush2.msra.mxu0 %v317
    %427 = vmatprep.subr.mxu0 0.0
    %428 = vmatpush2.msra.mxu0 %v316
    %429 = vmatprep.subr.mxu0 0.0
    %430 = vmatpush2.msra.mxu0 %v315
    %431 = vmatprep.subr.mxu0 0.0
    %432 = vmatpush2.msra.mxu0 %v314
    %433 = vmatprep.mubr.f32.mxu0 %v291
    %434 = vmatmul.mubr.f32.gmra.mxu0 %v290
    %v435 = vpop.f32.mrf.mxu0
    %v436 = vadd.f32 %v367, %v435
    %v437 = vpop.f32.mrf.mxu0
    %438 = vmatprep.mubr.f32.mxu0 %v295
    %439 = vmatmul.mubr.f32.gmra.mxu0 %v294
    %v440 = vpop.f32.mrf.mxu0
    %v441 = vadd.f32 %v367, %v440
    %v442 = vpop.f32.mrf.mxu0
    %443 = vdwg.mxu0
    %444 = vmatprep.subr.mxu0 0.0
    %445 = vmatpush1.msra.mxu0 %v345
    %446 = vmatprep.subr.mxu0 0.0
    %447 = vmatpush1.msra.mxu0 %v344
    %448 = vmatprep.subr.mxu0 0.0
    %449 = vmatpush1.msra.mxu0 %v343
    %450 = vmatprep.subr.mxu0 0.0
    %451 = vmatpush1.msra.mxu0 %v342
    %452 = vmatprep.subr.mxu0 0.0
    %453 = vmatpush1.msra.mxu0 %v341
    %454 = vmatprep.subr.mxu0 0.0
    %455 = vmatpush1.msra.mxu0 %v340
    %456 = vmatprep.subr.mxu0 0.0
    %457 = vmatpush1.msra.mxu0 %v339
    %458 = vmatprep.subr.mxu0 0.0
    %459 = vmatpush1.msra.mxu0 %v338
    %460 = vmatprep.subr.mxu0 0.0
    %461 = vmatpush1.msra.mxu0 %v337
    %462 = vmatprep.subr.mxu0 0.0
    %463 = vmatpush1.msra.mxu0 %v336
    %464 = vmatprep.subr.mxu0 0.0
    %465 = vmatpush1.msra.mxu0 %v335
    %466 = vmatprep.subr.mxu0 0.0
    %467 = vmatpush1.msra.mxu0 %v334
    %468 = vmatprep.subr.mxu0 0.0
    %469 = vmatpush1.msra.mxu0 %v333
    %470 = vmatprep.subr.mxu0 0.0
    %471 = vmatpush1.msra.mxu0 %v332
    %472 = vmatprep.subr.mxu0 0.0
    %473 = vmatpush1.msra.mxu0 %v331
    %474 = vmatprep.subr.mxu0 0.0
    %475 = vmatpush1.msra.mxu0 %v330
    %476 = vmatprep.subr.mxu0 0.0
    %477 = vmatpush2.msra.mxu0 %v361
    %478 = vmatprep.subr.mxu0 0.0
    %479 = vmatpush2.msra.mxu0 %v360
    %480 = vmatprep.subr.mxu0 0.0
    %481 = vmatpush2.msra.mxu0 %v359
    %482 = vmatprep.subr.mxu0 0.0
    %483 = vmatpush2.msra.mxu0 %v358
    %484 = vmatprep.subr.mxu0 0.0
    %485 = vmatpush2.msra.mxu0 %v357
    %486 = vmatprep.subr.mxu0 0.0
    %487 = vmatpush2.msra.mxu0 %v356
    %488 = vmatprep.subr.mxu0 0.0
    %489 = vmatpush2.msra.mxu0 %v355
    %490 = vmatprep.subr.mxu0 0.0
    %491 = vmatpush2.msra.mxu0 %v354
    %492 = vmatprep.subr.mxu0 0.0
    %493 = vmatpush2.msra.mxu0 %v353
    %494 = vmatprep.subr.mxu0 0.0
    %495 = vmatpush2.msra.mxu0 %v352
    %496 = vmatprep.subr.mxu0 0.0
    %497 = vmatpush2.msra.mxu0 %v351
    %498 = vmatprep.subr.mxu0 0.0
    %499 = vmatpush2.msra.mxu0 %v350
    %500 = vmatprep.subr.mxu0 0.0
    %501 = vmatpush2.msra.mxu0 %v349
    %502 = vmatprep.subr.mxu0 0.0
    %503 = vmatpush2.msra.mxu0 %v348
    %504 = vmatprep.subr.mxu0 0.0
    %505 = vmatpush2.msra.mxu0 %v347
    %506 = vmatprep.subr.mxu0 0.0
    %507 = vmatpush2.msra.mxu0 %v346
    %508 = vmatprep.mubr.f32.mxu0 %v293
    %509 = vmatmul.mubr.f32.gmra.mxu0 %v292
    %v510 = vpop.f32.mrf.mxu0
    %v511 = vadd.f32 %v436, %v510
    %v512 = vpop.f32.mrf.mxu0
    %513 = vmatprep.mubr.f32.mxu0 %v297
    %514 = vmatmul.mubr.f32.gmra.mxu0 %v296
    %v515 = vpop.f32.mrf.mxu0
    %v516 = vadd.f32 %v441, %v515
    %v517 = vpop.f32.mrf.mxu0
    %518 = vdwg.mxu0
    %519 = vst [vmem:[%s5] sm:$0xff] %v511
    %520 = vst [vmem:[%s5 + $0x8] sm:$0xff] %v516
    // Predicated region
    $region30: #{feed_forward.1} parent=1 // pred_check
      _
    $region31: #{feed_forward.1} parent=1 // pred_check_branch
      %522 = sbr.rel (0) target = $region33
    $region32: #{feed_forward.1} parent=1 // pred_region
      _
    $region33: #{feed_forward.1} parent=1 // pred_fallthru
      _
    // Predicated region
    $region34: #{feed_forward.1} parent=1 // pred_check
      _
    $region35: #{feed_forward.1} parent=1 // pred_check_branch
      %524 = sbr.rel (0) target = $region37
    $region36: #{feed_forward.1} parent=1 // pred_region
      _
    $region37: #{feed_forward.1} parent=1 // pred_fallthru
      _
    %525 = vsyncpa [#allocation3], 1
    %526 = vsyncpa [#allocation5], 1

</llo_original>
